<compile_context>
chip_gen: v6e
topology: v6e:2x2x1
jax: 0.10.0
libtpu: 0.0.40
codegen_flags: <defaults>
</compile_context>

<pallas_src>
import jax
import jax.numpy as jnp
from jax.experimental import pallas as pl
from jax.experimental.pallas import tpu as pltpu

HIDDEN = 256
LANE = 128
BATCH_ALIGN = 16      # bf16 sublane packing -> keep batch tiles 16-row aligned
K_ALIGN = 16          # bf16 sublane packing for w1's K (second-to-last) dim
DEFAULT_TM = 512      # batch tile: big enough to amortize grid-step overhead, small
                      # enough that large training batches still give >=2 steps (v7x
                      # megacore), and footprint stays well under v7x's 64 MiB VMEM.


def _round_up(n, m):
    return ((n + m - 1) // m) * m


def qnetwork_kernel(x_ref, w1_ref, b1_ref, w2_ref, b2_ref, w3_ref, b3_ref, o_ref):
    # x_ref:  (bm, obs_p)   bf16      w1_ref: (obs_p, 256)  bf16    b1_ref: (1, 256)   f32
    # w2_ref: (256, 256)    bf16                                    b2_ref: (1, 256)   f32
    # w3_ref: (256, act_p)  bf16                                    b3_ref: (1, act_p) f32
    # o_ref:  (bm, act_p)   bf16
    #
    # MXU matmuls take bf16 operands; accumulation, bias-add and ReLU stay f32
    # (portable to v5e, which has no bf16 VPU path).
    h1 = jnp.dot(x_ref[...], w1_ref[...],
                 preferred_element_type=jnp.float32) + b1_ref[...]
    h1 = jnp.maximum(h1, 0.0)

    h2 = jnp.dot(h1.astype(jnp.bfloat16), w2_ref[...],
                 preferred_element_type=jnp.float32) + b2_ref[...]
    h2 = jnp.maximum(h2, 0.0)

    out = jnp.dot(h2.astype(jnp.bfloat16), w3_ref[...],
                  preferred_element_type=jnp.float32) + b3_ref[...]
    o_ref[...] = out.astype(o_ref.dtype)


def prepare_params(params):
    """Pad + cast weights/biases ONCE (at init / after each optimizer step), not per call.

    params: f32 (in,out)-layout weights and (1,out) biases.
    Returns bf16 padded weights and f32 padded biases ready for qnetwork_forward.
    """
    w1, b1, w2, b2, w3, b3 = params
    obs, hidden = w1.shape
    act = w3.shape[1]
    assert w2.shape == (hidden, hidden) and w3.shape[0] == hidden

    obs_p = _round_up(obs, K_ALIGN)     # K dim only needs bf16 sublane alignment, not 128
    act_p = _round_up(act, LANE)        # output lane dim must stay 128-dense

    w1_p = jnp.pad(w1, ((0, obs_p - obs), (0, 0))).astype(jnp.bfloat16)
    w2_p = w2.astype(jnp.bfloat16)
    w3_p = jnp.pad(w3, ((0, 0), (0, act_p - act))).astype(jnp.bfloat16)
    b1_p = b1.astype(jnp.float32)
    b2_p = b2.astype(jnp.float32)
    b3_p = jnp.pad(b3, ((0, 0), (0, act_p - act))).astype(jnp.float32)
    return (w1_p, b1_p, w2_p, b2_p, w3_p, b3_p)


def qnetwork_forward(x, prepared_params, action_size, *, tm_max=DEFAULT_TM):
    """x: (batch, ...) like nn.Flatten input. prepared_params: output of prepare_params."""
    w1_p, b1_p, w2_p, b2_p, w3_p, b3_p = prepared_params
    obs_p, hidden = w1_p.shape
    act_p = w3_p.shape[1]

    batch = x.shape[0]
    x2d = x.reshape(batch, -1)                          # nn.Flatten
    obs = x2d.shape[1]
    assert obs <= obs_p and action_size <= act_p

    # Batch tiling: one big tile for inference-size batches (grid loop is serial on a TC),
    # multiple "parallel" tiles for training-size batches (shards across v7x's 2 TCs).
    bm = min(tm_max, _round_up(batch, BATCH_ALIGN))
    b_pad = _round_up(batch, bm)
    n_bm = b_pad // bm

    # Stream x as bf16 (dominant input); pad only if actually needed so the pad is a
    # no-op for aligned training batches / obs sizes.
    x_p = x2d.astype(jnp.bfloat16)
    if b_pad != batch or obs_p != obs:
        x_p = jnp.pad(x_p, ((0, b_pad - batch), (0, obs_p - obs)))

    flops = 2 * b_pad * (obs_p * hidden + hidden * hidden + hidden * act_p)
    bytes_accessed = (b_pad * obs_p * 2                                     # x (bf16)
                      + (w1_p.size + w2_p.size + w3_p.size) * 2             # weights (bf16)
                      + (b1_p.size + b2_p.size + b3_p.size) * 4             # biases (f32)
                      + b_pad * act_p * 2)                                  # out (bf16)

    out_p = pl.pallas_call(
        qnetwork_kernel,
        out_shape=jax.ShapeDtypeStruct((b_pad, act_p), jnp.bfloat16),
        grid=(n_bm,),
        in_specs=[
            pl.BlockSpec((bm, obs_p), lambda i: (i, 0)),        # x: tiled over batch
            pl.BlockSpec((obs_p, hidden), lambda i: (0, 0)),    # weights: resident in VMEM
            pl.BlockSpec((1, hidden), lambda i: (0, 0)),
            pl.BlockSpec((hidden, hidden), lambda i: (0, 0)),
            pl.BlockSpec((1, hidden), lambda i: (0, 0)),
            pl.BlockSpec((hidden, act_p), lambda i: (0, 0)),
            pl.BlockSpec((1, act_p), lambda i: (0, 0)),
        ],
        out_specs=pl.BlockSpec((bm, act_p), lambda i: (i, 0)),  # lane-dense 128-wide slab
        compiler_params=pltpu.CompilerParams(
            dimension_semantics=("parallel",),                   # batch axis -> megacore
        ),
        cost_estimate=pl.CostEstimate(
            flops=flops, transcendentals=0, bytes_accessed=bytes_accessed),
    )(x_p, w1_p, b1_p, w2_p, b2_p, w3_p, b3_p)

    # Strip batch / action padding; hand back f32 like the PyTorch module.
    return out_p[:batch, :action_size].astype(jnp.float32)


def init_params(key, obs_size, action_size, hidden=HIDDEN):
    """Deterministic synthetic init (uniform, like PyTorch's default Linear init)."""
    ks = jax.random.split(key, 6)

    def linear(kw, kb, fan_in, fan_out):
        bound = 1.0 / jnp.sqrt(fan_in)
        w = jax.random.uniform(kw, (fan_in, fan_out), jnp.float32, -bound, bound)
        b = jax.random.uniform(kb, (1, fan_out), jnp.float32, -bound, bound)
        return w, b

    w1, b1 = linear(ks[0], ks[1], obs_size, hidden)
    w2, b2 = linear(ks[2], ks[3], hidden, hidden)
    w3, b3 = linear(ks[4], ks[5], hidden, action_size)
    return (w1, b1, w2, b2, w3, b3)


def qnetwork_ref_bf16(x, params):
    """Plain-JAX reference matching the kernel numerics (bf16 operands/output, f32 accumulate)."""
    w1, b1, w2, b2, w3, b3 = params
    x2d = x.reshape(x.shape[0], -1).astype(jnp.bfloat16)
    h1 = jnp.maximum(jnp.dot(x2d, w1.astype(jnp.bfloat16),
                             preferred_element_type=jnp.float32) + b1, 0.0)
    h2 = jnp.maximum(jnp.dot(h1.astype(jnp.bfloat16), w2.astype(jnp.bfloat16),
                             preferred_element_type=jnp.float32) + b2, 0.0)
    out = jnp.dot(h2.astype(jnp.bfloat16), w3.astype(jnp.bfloat16),
                  preferred_element_type=jnp.float32) + b3
    return out.astype(jnp.bfloat16).astype(jnp.float32)


def qnetwork_ref_f32(x, params):
    """Pure-f32 reference (== PyTorch module forward)."""
    w1, b1, w2, b2, w3, b3 = params
    x2d = x.reshape(x.shape[0], -1)
    h1 = jnp.maximum(x2d @ w1 + b1, 0.0)
    h2 = jnp.maximum(h1 @ w2 + b2, 0.0)
    return h2 @ w3 + b3


if __name__ == "__main__":
    key = jax.random.PRNGKey(0)
    k_x, k_p = jax.random.split(key)

    batch = 8
    obs_size = 32          # a (4, 8) observation grid, flattened by nn.Flatten
    action_size = 8

    x = jax.random.normal(k_x, (batch, 4, 8), dtype=jnp.float32)
    params = init_params(k_p, obs_size, action_size)
    prepared = prepare_params(params)      # one-time weight prep, outside the hot path

    out = jax.block_until_ready(qnetwork_forward(x, prepared, action_size))
    assert out.shape == (batch, action_size)

    # Numerics check vs a reference using the same bf16-operand / f32-accumulate path.
    ref_bf16 = qnetwork_ref_bf16(x, params)
    assert jnp.allclose(out, ref_bf16, atol=1e-2, rtol=1e-2), "mismatch vs bf16 reference"

    # Semantics check vs the pure-f32 PyTorch forward (loose: bf16 quantization only).
    ref_f32 = qnetwork_ref_f32(x, params)
    assert jnp.allclose(out, ref_f32, atol=5e-2, rtol=5e-2), "mismatch vs f32 reference"

    print("KERNEL_OK")
</pallas_src>

<mosaic_0001>
module attributes {stable_mosaic.version = 11 : i64} {
  func.func @qnetwork_kernel(%arg0: i32, %arg1: memref<16x32xbf16, #tpu.memory_space<vmem>>, %arg2: memref<32x256xbf16, #tpu.memory_space<vmem>>, %arg3: memref<1x256xf32, #tpu.memory_space<vmem>>, %arg4: memref<256x256xbf16, #tpu.memory_space<vmem>>, %arg5: memref<1x256xf32, #tpu.memory_space<vmem>>, %arg6: memref<256x128xbf16, #tpu.memory_space<vmem>>, %arg7: memref<1x128xf32, #tpu.memory_space<vmem>>, %arg8: memref<16x128xbf16, #tpu.memory_space<vmem>>) attributes {dimension_semantics = [#tpu.dimension_semantics<parallel>], iteration_bounds = array<i64: 1>, scalar_prefetch = 0 : i64, scratch_operands = 0 : i64, tpu.core_type = #tpu.core_type<tc>, window_params = [{transform_indices = @transform_0, window_bounds = array<i64: 16, 32>}, {pipeline_mode = #tpu.pipeline_mode<synchronous>, transform_indices = @transform_1, window_bounds = array<i64: 32, 256>}, {pipeline_mode = #tpu.pipeline_mode<synchronous>, transform_indices = @transform_2, window_bounds = array<i64: 1, 256>}, {pipeline_mode = #tpu.pipeline_mode<synchronous>, transform_indices = @transform_3, window_bounds = array<i64: 256, 256>}, {pipeline_mode = #tpu.pipeline_mode<synchronous>, transform_indices = @transform_4, window_bounds = array<i64: 1, 256>}, {pipeline_mode = #tpu.pipeline_mode<synchronous>, transform_indices = @transform_5, window_bounds = array<i64: 256, 128>}, {pipeline_mode = #tpu.pipeline_mode<synchronous>, transform_indices = @transform_6, window_bounds = array<i64: 1, 128>}, {transform_indices = @transform_7, window_bounds = array<i64: 16, 128>}]} {
    %c0 = arith.constant 0 : index
    %c0_0 = arith.constant 0 : index
    %0 = vector.load %arg1[%c0, %c0_0] : memref<16x32xbf16, #tpu.memory_space<vmem>>, vector<16x32xbf16>
    %c0_1 = arith.constant 0 : index
    %c0_2 = arith.constant 0 : index
    %1 = vector.load %arg2[%c0_1, %c0_2] : memref<32x256xbf16, #tpu.memory_space<vmem>>, vector<32x256xbf16>
    %cst = arith.constant dense<0.000000e+00> : vector<16x256xf32>
    %2 = tpu.matmul %0, %1, %cst {dimension_numbers = #tpu.dot_dimension_numbers<[1], [0], [0], [1], [0, 0, 1, 1], [], []>} : vector<16x32xbf16>, vector<32x256xbf16>, vector<16x256xf32> -> vector<16x256xf32>
    %c0_3 = arith.constant 0 : index
    %c0_4 = arith.constant 0 : index
    %3 = vector.load %arg3[%c0_3, %c0_4] : memref<1x256xf32, #tpu.memory_space<vmem>>, vector<1x256xf32>
    %4 = vector.broadcast %3 : vector<1x256xf32> to vector<16x256xf32>
    %5 = arith.addf %2, %4 : vector<16x256xf32>
    %cst_5 = arith.constant 0.000000e+00 : f32
    %6 = vector.broadcast %cst_5 : f32 to vector<16x256xf32>
    %7 = arith.maximumf %5, %6 : vector<16x256xf32>
    %8 = arith.truncf %7 : vector<16x256xf32> to vector<16x256xbf16>
    %c0_6 = arith.constant 0 : index
    %c0_7 = arith.constant 0 : index
    %9 = vector.load %arg4[%c0_6, %c0_7] : memref<256x256xbf16, #tpu.memory_space<vmem>>, vector<256x256xbf16>
    %cst_8 = arith.constant dense<0.000000e+00> : vector<16x256xf32>
    %10 = tpu.matmul %8, %9, %cst_8 {dimension_numbers = #tpu.dot_dimension_numbers<[1], [0], [0], [1], [0, 0, 1, 1], [], []>} : vector<16x256xbf16>, vector<256x256xbf16>, vector<16x256xf32> -> vector<16x256xf32>
    %c0_9 = arith.constant 0 : index
    %c0_10 = arith.constant 0 : index
    %11 = vector.load %arg5[%c0_9, %c0_10] : memref<1x256xf32, #tpu.memory_space<vmem>>, vector<1x256xf32>
    %12 = vector.broadcast %11 : vector<1x256xf32> to vector<16x256xf32>
    %13 = arith.addf %10, %12 : vector<16x256xf32>
    %cst_11 = arith.constant 0.000000e+00 : f32
    %14 = vector.broadcast %cst_11 : f32 to vector<16x256xf32>
    %15 = arith.maximumf %13, %14 : vector<16x256xf32>
    %16 = arith.truncf %15 : vector<16x256xf32> to vector<16x256xbf16>
    %c0_12 = arith.constant 0 : index
    %c0_13 = arith.constant 0 : index
    %17 = vector.load %arg6[%c0_12, %c0_13] : memref<256x128xbf16, #tpu.memory_space<vmem>>, vector<256x128xbf16>
    %cst_14 = arith.constant dense<0.000000e+00> : vector<16x128xf32>
    %18 = tpu.matmul %16, %17, %cst_14 {dimension_numbers = #tpu.dot_dimension_numbers<[1], [0], [0], [1], [0, 0, 1, 1], [], []>} : vector<16x256xbf16>, vector<256x128xbf16>, vector<16x128xf32> -> vector<16x128xf32>
    %c0_15 = arith.constant 0 : index
    %c0_16 = arith.constant 0 : index
    %19 = vector.load %arg7[%c0_15, %c0_16] : memref<1x128xf32, #tpu.memory_space<vmem>>, vector<1x128xf32>
    %20 = vector.broadcast %19 : vector<1x128xf32> to vector<16x128xf32>
    %21 = arith.addf %18, %20 : vector<16x128xf32>
    %22 = arith.truncf %21 : vector<16x128xf32> to vector<16x128xbf16>
    %c0_17 = arith.constant 0 : index
    %c0_18 = arith.constant 0 : index
    %23 = vector.load %arg8[%c0_17, %c0_18] : memref<16x128xbf16, #tpu.memory_space<vmem>>, vector<16x128xbf16>
    tpu.vector_store %arg8[%c0_17, %c0_18], %22 {strides = array<i32>} : memref<16x128xbf16, #tpu.memory_space<vmem>>, vector<16x128xbf16>,
    return
  }
  func.func @transform_0(%arg0: i32) -> (i32, i32) {
    %c0_i32 = arith.constant 0 : i32
    %c0_i32_0 = arith.constant 0 : i32
    return %arg0, %c0_i32 : i32, i32
  }
  func.func @transform_1(%arg0: i32) -> (i32, i32) {
    %c0_i32 = arith.constant 0 : i32
    %c0_i32_0 = arith.constant 0 : i32
    %c0_i32_1 = arith.constant 0 : i32
    return %c0_i32, %c0_i32_0 : i32, i32
  }
  func.func @transform_2(%arg0: i32) -> (i32, i32) {
    %c0_i32 = arith.constant 0 : i32
    %c0_i32_0 = arith.constant 0 : i32
    %c0_i32_1 = arith.constant 0 : i32
    return %c0_i32, %c0_i32_0 : i32, i32
  }
  func.func @transform_3(%arg0: i32) -> (i32, i32) {
    %c0_i32 = arith.constant 0 : i32
    %c0_i32_0 = arith.constant 0 : i32
    %c0_i32_1 = arith.constant 0 : i32
    return %c0_i32, %c0_i32_0 : i32, i32
  }
  func.func @transform_4(%arg0: i32) -> (i32, i32) {
    %c0_i32 = arith.constant 0 : i32
    %c0_i32_0 = arith.constant 0 : i32
    %c0_i32_1 = arith.constant 0 : i32
    return %c0_i32, %c0_i32_0 : i32, i32
  }
  func.func @transform_5(%arg0: i32) -> (i32, i32) {
    %c0_i32 = arith.constant 0 : i32
    %c0_i32_0 = arith.constant 0 : i32
    %c0_i32_1 = arith.constant 0 : i32
    return %c0_i32, %c0_i32_0 : i32, i32
  }
  func.func @transform_6(%arg0: i32) -> (i32, i32) {
    %c0_i32 = arith.constant 0 : i32
    %c0_i32_0 = arith.constant 0 : i32
    %c0_i32_1 = arith.constant 0 : i32
    return %c0_i32, %c0_i32_0 : i32, i32
  }
  func.func @transform_7(%arg0: i32) -> (i32, i32) {
    %c0_i32 = arith.constant 0 : i32
    %c0_i32_0 = arith.constant 0 : i32
    return %arg0, %c0_i32 : i32, i32
  }
}

</mosaic_0001>

<llo_original>
// kernel: tpu_custom_call.1
$region0: #{tpu_custom_call.1}
  #allocation0 [shape = 'u32[]', space=smem, size = 0x4, offset = 0x4, fixed_abs, tag = 'smem constant byte address 0x4 - core index']
  #allocation1 [shape = 'u32[144,128]{1,0:T(1,128)}', space=vmem, size = 0x12000, scoped, tag = 'internal scratch']
  %s0 = inlined_call_operand.hbm [shape: bf16[16,32], index: 0, kind: input, shape index: {}]
  %s1 = inlined_call_operand.hbm [shape: bf16[32,256], index: 1, kind: input, shape index: {}]
  %s2 = inlined_call_operand.vmem [shape: f32[1,256], index: 2, kind: input, shape index: {}]
  %s3 = inlined_call_operand.hbm [shape: bf16[256,256], index: 3, kind: input, shape index: {}]
  %s4 = inlined_call_operand.vmem [shape: f32[1,256], index: 4, kind: input, shape index: {}]
  %s5 = inlined_call_operand.hbm [shape: bf16[256,128], index: 5, kind: input, shape index: {}]
  %s6 = inlined_call_operand.vmem [shape: f32[1,128], index: 6, kind: input, shape index: {}]
  %s7 = inlined_call_operand.hbm [shape: bf16[16,128], index: 7, kind: output, shape index: {}]
  %s8 = sld [smem:[#allocation0]]
  $region54: #{tpu_custom_call.1} parent=0
    _
  %s10 = ssub.s32 1, %s8
  %s11 = scalar_select 0, %s10, %s8
  $region1: #{tpu_custom_call.1} parent=0
    #allocation2 [shape = 'u8[4096]{0}', space=vmem, size = 0x1000, scoped, tag = 'input window, operand 0, single buffered']
    #allocation3 [shape = 's32[1]{0}', space=sflag, size = 0x4, scoped, tag = 'scoped memory for tpu_custom_call.1']
    #allocation4 [shape = 's32[1]{0}', space=sflag, size = 0x4, scoped, tag = 'scoped memory for tpu_custom_call.1']
    #allocation5 [shape = 'u8[16384]{0}', space=vmem, size = 0x4000, scoped, tag = 'input window, operand 1, single buffered']
    #allocation6 [shape = 's32[1]{0}', space=sflag, size = 0x4, scoped, tag = 'scoped memory for tpu_custom_call.1']
    #allocation7 [shape = 'u8[131072]{0}', space=vmem, size = 0x20000, scoped, tag = 'input window, operand 3, single buffered']
    #allocation8 [shape = 'u8[65536]{0}', space=vmem, size = 0x10000, scoped, tag = 'input window, operand 5, single buffered']
    #allocation9 [shape = 's32[1]{0}', space=sflag, size = 0x4, scoped, tag = 'scoped memory for tpu_custom_call.1']
    #allocation10 [shape = 'u8[4096]{0}', space=vmem, size = 0x1000, scoped, tag = 'output window, operand 0, single buffered']
    %12 = vsyncpa [#allocation3], 0
    %13 = vsyncpa [#allocation6], 0
    %14 = vsyncpa [#allocation9], 0
    %15 = vsyncpa [#allocation4], 0
    // Predicated region
    $region2: #{tpu_custom_call.1} parent=1 // pred_check
      _
    $region3: #{tpu_custom_call.1} parent=1 // pred_check_branch
      %17 = sbr.rel (0) target = $region5
    $region4: #{tpu_custom_call.1} parent=1 // pred_region
      %s19 = ssub.s32 128, 128
      %20 = vsyncadd [#allocation3], %s19
      %s21 = sshll.u32 [#allocation2], 4
      %s22 = int_to_ptr.vmem [resolvable:$true] %s21
      %27 = dma.hbm_to_vmem [thread:$0]  %s0, 128, %s22, [#allocation3], 64, 64, 4
    $region5: #{tpu_custom_call.1} parent=1 // pred_fallthru
      _
    // Predicated region
    $region6: #{tpu_custom_call.1} parent=1 // pred_check
      _
    $region7: #{tpu_custom_call.1} parent=1 // pred_check_branch
      %29 = sbr.rel (0) target = $region9
    $region8: #{tpu_custom_call.1} parent=1 // pred_region
      %s31 = ssub.s32 512, 512
      %32 = vsyncadd [#allocation6], %s31
      %s33 = sshll.u32 [#allocation5], 4
      %s34 = int_to_ptr.vmem [resolvable:$true] %s33
      %39 = dma.hbm_to_vmem [thread:$0]  %s1, 512, %s34, [#allocation6], 128, 128, 8
    $region9: #{tpu_custom_call.1} parent=1 // pred_fallthru
      _
    // Predicated region
    $region10: #{tpu_custom_call.1} parent=1 // pred_check
      _
    $region11: #{tpu_custom_call.1} parent=1 // pred_check_branch
      %41 = sbr.rel (0) target = $region13
    $region12: #{tpu_custom_call.1} parent=1 // pred_region
      _
    $region13: #{tpu_custom_call.1} parent=1 // pred_fallthru
      _
    // Predicated region
    $region14: #{tpu_custom_call.1} parent=1 // pred_check
      _
    $region15: #{tpu_custom_call.1} parent=1 // pred_check_branch
      %43 = sbr.rel (0) target = $region17
    $region16: #{tpu_custom_call.1} parent=1 // pred_region
      %s45 = ssub.s32 4096, 4096
      %46 = vsyncadd [#allocation6], %s45
      %s47 = sshll.u32 [#allocation7], 4
      %s48 = int_to_ptr.vmem [resolvable:$true] %s47
      %53 = dma.hbm_to_vmem [thread:$0]  %s3, 4096, %s48, [#allocation6], 128, 128, 8
    $region17: #{tpu_custom_call.1} parent=1 // pred_fallthru
      _
    // Predicated region
    $region18: #{tpu_custom_call.1} parent=1 // pred_check
      _
    $region19: #{tpu_custom_call.1} parent=1 // pred_check_branch
      %55 = sbr.rel (0) target = $region21
    $region20: #{tpu_custom_call.1} parent=1 // pred_region
      _
    $region21: #{tpu_custom_call.1} parent=1 // pred_fallthru
      _
    // Predicated region
    $region22: #{tpu_custom_call.1} parent=1 // pred_check
      _
    $region23: #{tpu_custom_call.1} parent=1 // pred_check_branch
      %57 = sbr.rel (0) target = $region25
    $region24: #{tpu_custom_call.1} parent=1 // pred_region
      %s59 = ssub.s32 2048, 2048
      %60 = vsyncadd [#allocation9], %s59
      %s61 = sshll.u32 [#allocation8], 4
      %s62 = int_to_ptr.vmem [resolvable:$true] %s61
      %67 = dma.hbm_to_vmem [thread:$0]  %s5, 2048, %s62, [#allocation9], 64, 64, 4
    $region25: #{tpu_custom_call.1} parent=1 // pred_fallthru
      _
    // Predicated region
    $region26: #{tpu_custom_call.1} parent=1 // pred_check
      _
    $region27: #{tpu_custom_call.1} parent=1 // pred_check_branch
      %69 = sbr.rel (0) target = $region29
    $region28: #{tpu_custom_call.1} parent=1 // pred_region
      _
    $region29: #{tpu_custom_call.1} parent=1 // pred_fallthru
      _
    // Predicated region
    $region30: #{tpu_custom_call.1} parent=1 // pred_check
      _
    $region31: #{tpu_custom_call.1} parent=1 // pred_check_branch
      %71 = sbr.rel (0) target = $region33
    $region32: #{tpu_custom_call.1} parent=1 // pred_region
      %72 = dma.done [#allocation3], 128
    $region33: #{tpu_custom_call.1} parent=1 // pred_fallthru
      _
    // Predicated region
    $region34: #{tpu_custom_call.1} parent=1 // pred_check
      _
    $region35: #{tpu_custom_call.1} parent=1 // pred_check_branch
      %74 = sbr.rel (0) target = $region37
    $region36: #{tpu_custom_call.1} parent=1 // pred_region
      %75 = dma.done [#allocation6], 512
    $region37: #{tpu_custom_call.1} parent=1 // pred_fallthru
      _
    // Predicated region
    $region38: #{tpu_custom_call.1} parent=1 // pred_check
      _
    $region39: #{tpu_custom_call.1} parent=1 // pred_check_branch
      %77 = sbr.rel (0) target = $region41
    $region40: #{tpu_custom_call.1} parent=1 // pred_region
      %78 = dma.done [#allocation6], 4096
    $region41: #{tpu_custom_call.1} parent=1 // pred_fallthru
      _
    // Predicated region
    $region42: #{tpu_custom_call.1} parent=1 // pred_check
      _
    $region43: #{tpu_custom_call.1} parent=1 // pred_check_branch
      %80 = sbr.rel (0) target = $region45
    $region44: #{tpu_custom_call.1} parent=1 // pred_region
      %81 = dma.done [#allocation9], 2048
    $region45: #{tpu_custom_call.1} parent=1 // pred_fallthru
      _
    %v83 = vld [vmem:[#allocation2] sm:$0xf]
    %v84 = vld [vmem:[#allocation2 + $0x4] sm:$0xf]
    %v85 = vld [vmem:[#allocation5] sm:$0xff]
    %v86 = vld [vmem:[#allocation5 + $0x8] sm:$0xff]
    %v87 = vld [vmem:[#allocation5 + $0x10] sm:$0xff]
    %v88 = vld [vmem:[#allocation5 + $0x18] sm:$0xff]
    %v89 = vld [vmem:[%s2] sm:$0x3]
    %v91 = vlaneseq
    %v92 = vshrl.u32 %v91, 7
    %v93 = vsub.s32 0, %v92
    %v94 = vrot.slane %v89, %v93
    %v95 = vlaneseq
    %v96 = vshrl.u32 %v95, 7
    %v97 = vsub.s32 1, %v96
    %v98 = vrot.slane %v89, %v97
    %v103 = vunpack.c.l.b16 %v83
    %v104 = vunpack.c.l.b16 %v84
    %v105 = vpack.c.b16 %v104, %v103
    %v110 = vunpack.c.l.b16 %v85
    %v111 = vunpack.c.h.b16 %v85
    %v112 = vunpack.c.l.b16 %v86
    %v113 = vunpack.c.h.b16 %v86
    %v114 = vunpack.c.l.b16 %v87
    %v115 = vunpack.c.h.b16 %v87
    %v116 = vunpack.c.l.b16 %v88
    %v117 = vunpack.c.h.b16 %v88
    %v118 = vpack.c.b16 %v112, %v110
    %v119 = vpack.c.b16 %v113, %v111
    %v120 = vpack.c.b16 %v116, %v114
    %v121 = vpack.c.b16 %v117, %v115
    %vm126 = vcmask 261120
    %v128 = vsel %vm126, %v105, 0
    %130 = vmatprep.subr.bf16.mxu0 0
    %131 = vmatpush1.bf16.msra.mxu0 0
    %132 = vmatprep.subr.bf16.mxu0 0
    %133 = vmatpush1.bf16.msra.mxu0 0
    %134 = vmatprep.subr.bf16.mxu0 0
    %135 = vmatpush1.bf16.msra.mxu0 0
    %136 = vmatprep.subr.bf16.mxu0 0
    %137 = vmatpush1.bf16.msra.mxu0 0
    %138 = vmatprep.subr.bf16.mxu0 0
    %139 = vmatpush1.bf16.msra.mxu0 0
    %140 = vmatprep.subr.bf16.mxu0 0
    %141 = vmatpush1.bf16.msra.mxu0 0
    %142 = vmatprep.subr.bf16.mxu0 %v121
    %143 = vmatpush1.bf16.msra.mxu0 %v120
    %144 = vmatprep.subr.bf16.mxu0 %v119
    %145 = vmatpush1.bf16.msra.mxu0 %v118
    %146 = vmatprep.subr.bf16.mxu0 0
    %147 = vmatpush2.bf16.msra.mxu0 0
    %148 = vmatprep.subr.bf16.mxu0 0
    %149 = vmatpush2.bf16.msra.mxu0 0
    %150 = vmatprep.subr.bf16.mxu0 0
    %151 = vmatpush2.bf16.msra.mxu0 0
    %152 = vmatprep.subr.bf16.mxu0 0
    %153 = vmatpush2.bf16.msra.mxu0 0
    %154 = vmatprep.subr.bf16.mxu0 0
    %155 = vmatpush2.bf16.msra.mxu0 0
    %156 = vmatprep.subr.bf16.mxu0 0
    %157 = vmatpush2.bf16.msra.mxu0 0
    %158 = vmatprep.subr.bf16.mxu0 0
    %159 = vmatpush2.bf16.msra.mxu0 0
    %160 = vmatprep.subr.bf16.mxu0 0
    %161 = vmatpush2.bf16.msra.mxu0 0
    %162 = vmatprep.mubr.bf16.mxu0 0
    %163 = vmatmul.mubr.bf16.gmra.mxu0 %v128
    %v164 = vpop.f32.mrf.mxu0
    %v165 = vadd.f32 %v94, %v164
    %v166 = vpop.f32.mrf.mxu0
    %v167 = vadd.f32 %v98, %v166
    %v168 = vpop.f32.mrf.mxu0
    %v169 = vadd.f32 %v94, %v168
    %v170 = vpop.f32.mrf.mxu0
    %v171 = vadd.f32 %v98, %v170
    %172 = vdwg.mxu0
    %v173 = vmax.f32 %v165, 0.0
    %v174 = vmax.f32 %v167, 0.0
    %v175 = vmax.f32 %v169, 0.0
    %v176 = vmax.f32 %v171, 0.0
    %v177 = vpack.c.bf16 %v175, %v173
    %v178 = vpack.c.bf16 %v176, %v174
    %v179 = vld [vmem:[#allocation7] sm:$0xff]
    %v180 = vld [vmem:[#allocation7 + $0x8] sm:$0xff]
    %v181 = vld [vmem:[#allocation7 + $0x10] sm:$0xff]
    %v182 = vld [vmem:[#allocation7 + $0x18] sm:$0xff]
    %v183 = vld [vmem:[#allocation7 + $0x20] sm:$0xff]
    %v184 = vld [vmem:[#allocation7 + $0x28] sm:$0xff]
    %v185 = vld [vmem:[#allocation7 + $0x30] sm:$0xff]
    %v186 = vld [vmem:[#allocation7 + $0x38] sm:$0xff]
    %v187 = vld [vmem:[#allocation7 + $0x40] sm:$0xff]
    %v188 = vld [vmem:[#allocation7 + $0x48] sm:$0xff]
    %v189 = vld [vmem:[#allocation7 + $0x50] sm:$0xff]
    %v190 = vld [vmem:[#allocation7 + $0x58] sm:$0xff]
    %v191 = vld [vmem:[#allocation7 + $0x60] sm:$0xff]
    %v192 = vld [vmem:[#allocation7 + $0x68] sm:$0xff]
    %v193 = vld [vmem:[#allocation7 + $0x70] sm:$0xff]
    %v194 = vld [vmem:[#allocation7 + $0x78] sm:$0xff]
    %v195 = vld [vmem:[#allocation7 + $0x80] sm:$0xff]
    %v196 = vld [vmem:[#allocation7 + $0x88] sm:$0xff]
    %v197 = vld [vmem:[#allocation7 + $0x90] sm:$0xff]
    %v198 = vld [vmem:[#allocation7 + $0x98] sm:$0xff]
    %v199 = vld [vmem:[#allocation7 + $0xa0] sm:$0xff]
    %v200 = vld [vmem:[#allocation7 + $0xa8] sm:$0xff]
    %v201 = vld [vmem:[#allocation7 + $0xb0] sm:$0xff]
    %v202 = vld [vmem:[#allocation7 + $0xb8] sm:$0xff]
    %v203 = vld [vmem:[#allocation7 + $0xc0] sm:$0xff]
    %v204 = vld [vmem:[#allocation7 + $0xc8] sm:$0xff]
    %v205 = vld [vmem:[#allocation7 + $0xd0] sm:$0xff]
    %v206 = vld [vmem:[#allocation7 + $0xd8] sm:$0xff]
    %v207 = vld [vmem:[#allocation7 + $0xe0] sm:$0xff]
    %v208 = vld [vmem:[#allocation7 + $0xe8] sm:$0xff]
    %v209 = vld [vmem:[#allocation7 + $0xf0] sm:$0xff]
    %v210 = vld [vmem:[#allocation7 + $0xf8] sm:$0xff]
    %v211 = vld [vmem:[%s4] sm:$0x3]
    %v213 = vlaneseq
    %v214 = vshrl.u32 %v213, 7
    %v215 = vsub.s32 0, %v214
    %v216 = vrot.slane %v211, %v215
    %v217 = vlaneseq
    %v218 = vshrl.u32 %v217, 7
    %v219 = vsub.s32 1, %v218
    %v220 = vrot.slane %v211, %v219
    %v255 = vunpack.c.l.b16 %v179
    %v256 = vunpack.c.h.b16 %v179
    %v257 = vunpack.c.l.b16 %v180
    %v258 = vunpack.c.h.b16 %v180
    %v259 = vunpack.c.l.b16 %v181
    %v260 = vunpack.c.h.b16 %v181
    %v261 = vunpack.c.l.b16 %v182
    %v262 = vunpack.c.h.b16 %v182
    %v263 = vunpack.c.l.b16 %v183
    %v264 = vunpack.c.h.b16 %v183
    %v265 = vunpack.c.l.b16 %v184
    %v266 = vunpack.c.h.b16 %v184
    %v267 = vunpack.c.l.b16 %v185
    %v268 = vunpack.c.h.b16 %v185
    %v269 = vunpack.c.l.b16 %v186
    %v270 = vunpack.c.h.b16 %v186
    %v271 = vunpack.c.l.b16 %v187
    %v272 = vunpack.c.h.b16 %v187
    %v273 = vunpack.c.l.b16 %v188
    %v274 = vunpack.c.h.b16 %v188
    %v275 = vunpack.c.l.b16 %v189
    %v276 = vunpack.c.h.b16 %v189
    %v277 = vunpack.c.l.b16 %v190
    %v278 = vunpack.c.h.b16 %v190
    %v279 = vunpack.c.l.b16 %v191
    %v280 = vunpack.c.h.b16 %v191
    %v281 = vunpack.c.l.b16 %v192
    %v282 = vunpack.c.h.b16 %v192
    %v283 = vunpack.c.l.b16 %v193
    %v284 = vunpack.c.h.b16 %v193
    %v285 = vunpack.c.l.b16 %v194
    %v286 = vunpack.c.h.b16 %v194
    %v287 = vunpack.c.l.b16 %v195
    %v288 = vunpack.c.h.b16 %v195
    %v289 = vunpack.c.l.b16 %v196
    %v290 = vunpack.c.h.b16 %v196
    %v291 = vunpack.c.l.b16 %v197
    %v292 = vunpack.c.h.b16 %v197
    %v293 = vunpack.c.l.b16 %v198
    %v294 = vunpack.c.h.b16 %v198
    %v295 = vunpack.c.l.b16 %v199
    %v296 = vunpack.c.h.b16 %v199
    %v297 = vunpack.c.l.b16 %v200
    %v298 = vunpack.c.h.b16 %v200
    %v299 = vunpack.c.l.b16 %v201
    %v300 = vunpack.c.h.b16 %v201
    %v301 = vunpack.c.l.b16 %v202
    %v302 = vunpack.c.h.b16 %v202
    %v303 = vunpack.c.l.b16 %v203
    %v304 = vunpack.c.h.b16 %v203
    %v305 = vunpack.c.l.b16 %v204
    %v306 = vunpack.c.h.b16 %v204
    %v307 = vunpack.c.l.b16 %v205
    %v308 = vunpack.c.h.b16 %v205
    %v309 = vunpack.c.l.b16 %v206
    %v310 = vunpack.c.h.b16 %v206
    %v311 = vunpack.c.l.b16 %v207
    %v312 = vunpack.c.h.b16 %v207
    %v313 = vunpack.c.l.b16 %v208
    %v314 = vunpack.c.h.b16 %v208
    %v315 = vunpack.c.l.b16 %v209
    %v316 = vunpack.c.h.b16 %v209
    %v317 = vunpack.c.l.b16 %v210
    %v318 = vunpack.c.h.b16 %v210
    %v319 = vpack.c.b16 %v257, %v255
    %v320 = vpack.c.b16 %v258, %v256
    %v321 = vpack.c.b16 %v261, %v259
    %v322 = vpack.c.b16 %v262, %v260
    %v323 = vpack.c.b16 %v265, %v263
    %v324 = vpack.c.b16 %v266, %v264
    %v325 = vpack.c.b16 %v269, %v267
    %v326 = vpack.c.b16 %v270, %v268
    %v327 = vpack.c.b16 %v273, %v271
    %v328 = vpack.c.b16 %v274, %v272
    %v329 = vpack.c.b16 %v277, %v275
    %v330 = vpack.c.b16 %v278, %v276
    %v331 = vpack.c.b16 %v281, %v279
    %v332 = vpack.c.b16 %v282, %v280
    %v333 = vpack.c.b16 %v285, %v283
    %v334 = vpack.c.b16 %v286, %v284
    %v335 = vpack.c.b16 %v289, %v287
    %v336 = vpack.c.b16 %v290, %v288
    %v337 = vpack.c.b16 %v293, %v291
    %v338 = vpack.c.b16 %v294, %v292
    %v339 = vpack.c.b16 %v297, %v295
    %v340 = vpack.c.b16 %v298, %v296
    %v341 = vpack.c.b16 %v301, %v299
    %v342 = vpack.c.b16 %v302, %v300
    %v343 = vpack.c.b16 %v305, %v303
    %v344 = vpack.c.b16 %v306, %v304
    %v345 = vpack.c.b16 %v309, %v307
    %v346 = vpack.c.b16 %v310, %v308
    %v347 = vpack.c.b16 %v313, %v311
    %v348 = vpack.c.b16 %v314, %v312
    %v349 = vpack.c.b16 %v317, %v315
    %v350 = vpack.c.b16 %v318, %v316
    %383 = vmatprep.subr.bf16.mxu0 %v334
    %384 = vmatpush1.bf16.msra.mxu0 %v333
    %385 = vmatprep.subr.bf16.mxu0 %v332
    %386 = vmatpush1.bf16.msra.mxu0 %v331
    %387 = vmatprep.subr.bf16.mxu0 %v330
    %388 = vmatpush1.bf16.msra.mxu0 %v329
    %389 = vmatprep.subr.bf16.mxu0 %v328
    %390 = vmatpush1.bf16.msra.mxu0 %v327
    %391 = vmatprep.subr.bf16.mxu0 %v326
    %392 = vmatpush1.bf16.msra.mxu0 %v325
    %393 = vmatprep.subr.bf16.mxu0 %v324
    %394 = vmatpush1.bf16.msra.mxu0 %v323
    %395 = vmatprep.subr.bf16.mxu0 %v322
    %396 = vmatpush1.bf16.msra.mxu0 %v321
    %397 = vmatprep.subr.bf16.mxu0 %v320
    %398 = vmatpush1.bf16.msra.mxu0 %v319
    %399 = vmatprep.subr.bf16.mxu0 %v350
    %400 = vmatpush2.bf16.msra.mxu0 %v349
    %401 = vmatprep.subr.bf16.mxu0 %v348
    %402 = vmatpush2.bf16.msra.mxu0 %v347
    %403 = vmatprep.subr.bf16.mxu0 %v346
    %404 = vmatpush2.bf16.msra.mxu0 %v345
    %405 = vmatprep.subr.bf16.mxu0 %v344
    %406 = vmatpush2.bf16.msra.mxu0 %v343
    %407 = vmatprep.subr.bf16.mxu0 %v342
    %408 = vmatpush2.bf16.msra.mxu0 %v341
    %409 = vmatprep.subr.bf16.mxu0 %v340
    %410 = vmatpush2.bf16.msra.mxu0 %v339
    %411 = vmatprep.subr.bf16.mxu0 %v338
    %412 = vmatpush2.bf16.msra.mxu0 %v337
    %413 = vmatprep.subr.bf16.mxu0 %v336
    %414 = vmatpush2.bf16.msra.mxu0 %v335
    %415 = vmatprep.mubr.bf16.mxu0 %v178
    %416 = vmatmul.mubr.bf16.gmra.mxu0 %v177
    %v417 = vpop.f32.mrf.mxu0
    %v418 = vadd.f32 %v216, %v417
    %v419 = vpop.f32.mrf.mxu0
    %v420 = vadd.f32 %v220, %v419
    %v421 = vpop.f32.mrf.mxu0
    %v422 = vadd.f32 %v216, %v421
    %v423 = vpop.f32.mrf.mxu0
    %v424 = vadd.f32 %v220, %v423
    %425 = vdwg.mxu0
    %v426 = vmax.f32 %v418, 0.0
    %v427 = vmax.f32 %v420, 0.0
    %v428 = vmax.f32 %v422, 0.0
    %v429 = vmax.f32 %v424, 0.0
    %v430 = vpack.c.bf16 %v428, %v426
    %v431 = vpack.c.bf16 %v429, %v427
    %v432 = vld [vmem:[#allocation8] sm:$0xf]
    %v433 = vld [vmem:[#allocation8 + $0x4] sm:$0xf]
    %v434 = vld [vmem:[#allocation8 + $0x8] sm:$0xf]
    %v435 = vld [vmem:[#allocation8 + $0xc] sm:$0xf]
    %v436 = vld [vmem:[#allocation8 + $0x10] sm:$0xf]
    %v437 = vld [vmem:[#allocation8 + $0x14] sm:$0xf]
    %v438 = vld [vmem:[#allocation8 + $0x18] sm:$0xf]
    %v439 = vld [vmem:[#allocation8 + $0x1c] sm:$0xf]
    %v440 = vld [vmem:[#allocation8 + $0x20] sm:$0xf]
    %v441 = vld [vmem:[#allocation8 + $0x24] sm:$0xf]
    %v442 = vld [vmem:[#allocation8 + $0x28] sm:$0xf]
    %v443 = vld [vmem:[#allocation8 + $0x2c] sm:$0xf]
    %v444 = vld [vmem:[#allocation8 + $0x30] sm:$0xf]
    %v445 = vld [vmem:[#allocation8 + $0x34] sm:$0xf]
    %v446 = vld [vmem:[#allocation8 + $0x38] sm:$0xf]
    %v447 = vld [vmem:[#allocation8 + $0x3c] sm:$0xf]
    %v448 = vld [vmem:[#allocation8 + $0x40] sm:$0xf]
    %v449 = vld [vmem:[#allocation8 + $0x44] sm:$0xf]
    %v450 = vld [vmem:[#allocation8 + $0x48] sm:$0xf]
    %v451 = vld [vmem:[#allocation8 + $0x4c] sm:$0xf]
    %v452 = vld [vmem:[#allocation8 + $0x50] sm:$0xf]
    %v453 = vld [vmem:[#allocation8 + $0x54] sm:$0xf]
    %v454 = vld [vmem:[#allocation8 + $0x58] sm:$0xf]
    %v455 = vld [vmem:[#allocation8 + $0x5c] sm:$0xf]
    %v456 = vld [vmem:[#allocation8 + $0x60] sm:$0xf]
    %v457 = vld [vmem:[#allocation8 + $0x64] sm:$0xf]
    %v458 = vld [vmem:[#allocation8 + $0x68] sm:$0xf]
    %v459 = vld [vmem:[#allocation8 + $0x6c] sm:$0xf]
    %v460 = vld [vmem:[#allocation8 + $0x70] sm:$0xf]
    %v461 = vld [vmem:[#allocation8 + $0x74] sm:$0xf]
    %v462 = vld [vmem:[#allocation8 + $0x78] sm:$0xf]
    %v463 = vld [vmem:[#allocation8 + $0x7c] sm:$0xf]
    %v464 = vld [vmem:[%s6] sm:$0x1]
    %v466 = vlaneseq
    %v467 = vshrl.u32 %v466, 7
    %v468 = vsub.s32 0, %v467
    %v469 = vrot.slane %v464, %v468
    %v503 = vunpack.c.l.b16 %v432
    %v504 = vunpack.c.l.b16 %v433
    %v505 = vunpack.c.l.b16 %v434
    %v506 = vunpack.c.l.b16 %v435
    %v507 = vunpack.c.l.b16 %v436
    %v508 = vunpack.c.l.b16 %v437
    %v509 = vunpack.c.l.b16 %v438
    %v510 = vunpack.c.l.b16 %v439
    %v511 = vunpack.c.l.b16 %v440
    %v512 = vunpack.c.l.b16 %v441
    %v513 = vunpack.c.l.b16 %v442
    %v514 = vunpack.c.l.b16 %v443
    %v515 = vunpack.c.l.b16 %v444
    %v516 = vunpack.c.l.b16 %v445
    %v517 = vunpack.c.l.b16 %v446
    %v518 = vunpack.c.l.b16 %v447
    %v519 = vunpack.c.l.b16 %v448
    %v520 = vunpack.c.l.b16 %v449
    %v521 = vunpack.c.l.b16 %v450
    %v522 = vunpack.c.l.b16 %v451
    %v523 = vunpack.c.l.b16 %v452
    %v524 = vunpack.c.l.b16 %v453
    %v525 = vunpack.c.l.b16 %v454
    %v526 = vunpack.c.l.b16 %v455
    %v527 = vunpack.c.l.b16 %v456
    %v528 = vunpack.c.l.b16 %v457
    %v529 = vunpack.c.l.b16 %v458
    %v530 = vunpack.c.l.b16 %v459
    %v531 = vunpack.c.l.b16 %v460
    %v532 = vunpack.c.l.b16 %v461
    %v533 = vunpack.c.l.b16 %v462
    %v534 = vunpack.c.l.b16 %v463
    %v535 = vpack.c.b16 %v504, %v503
    %v536 = vpack.c.b16 %v506, %v505
    %v537 = vpack.c.b16 %v508, %v507
    %v538 = vpack.c.b16 %v510, %v509
    %v539 = vpack.c.b16 %v512, %v511
    %v540 = vpack.c.b16 %v514, %v513
    %v541 = vpack.c.b16 %v516, %v515
    %v542 = vpack.c.b16 %v518, %v517
    %v543 = vpack.c.b16 %v520, %v519
    %v544 = vpack.c.b16 %v522, %v521
    %v545 = vpack.c.b16 %v524, %v523
    %v546 = vpack.c.b16 %v526, %v525
    %v547 = vpack.c.b16 %v528, %v527
    %v548 = vpack.c.b16 %v530, %v529
    %v549 = vpack.c.b16 %v532, %v531
    %v550 = vpack.c.b16 %v534, %v533
    %567 = vmatprep.subr.bf16.mxu0 0
    %568 = vmatpush1.bf16.msra.mxu0 %v542
    %569 = vmatprep.subr.bf16.mxu0 0
    %570 = vmatpush1.bf16.msra.mxu0 %v541
    %571 = vmatprep.subr.bf16.mxu0 0
    %572 = vmatpush1.bf16.msra.mxu0 %v540
    %573 = vmatprep.subr.bf16.mxu0 0
    %574 = vmatpush1.bf16.msra.mxu0 %v539
    %575 = vmatprep.subr.bf16.mxu0 0
    %576 = vmatpush1.bf16.msra.mxu0 %v538
    %577 = vmatprep.subr.bf16.mxu0 0
    %578 = vmatpush1.bf16.msra.mxu0 %v537
    %579 = vmatprep.subr.bf16.mxu0 0
    %580 = vmatpush1.bf16.msra.mxu0 %v536
    %581 = vmatprep.subr.bf16.mxu0 0
    %582 = vmatpush1.bf16.msra.mxu0 %v535
    %583 = vmatprep.subr.bf16.mxu0 0
    %584 = vmatpush2.bf16.msra.mxu0 %v550
    %585 = vmatprep.subr.bf16.mxu0 0
    %586 = vmatpush2.bf16.msra.mxu0 %v549
    %587 = vmatprep.subr.bf16.mxu0 0
    %588 = vmatpush2.bf16.msra.mxu0 %v548
    %589 = vmatprep.subr.bf16.mxu0 0
    %590 = vmatpush2.bf16.msra.mxu0 %v547
    %591 = vmatprep.subr.bf16.mxu0 0
    %592 = vmatpush2.bf16.msra.mxu0 %v546
    %593 = vmatprep.subr.bf16.mxu0 0
    %594 = vmatpush2.bf16.msra.mxu0 %v545
    %595 = vmatprep.subr.bf16.mxu0 0
    %596 = vmatpush2.bf16.msra.mxu0 %v544
    %597 = vmatprep.subr.bf16.mxu0 0
    %598 = vmatpush2.bf16.msra.mxu0 %v543
    %599 = vmatprep.mubr.bf16.mxu0 %v431
    %600 = vmatmul.mubr.bf16.gmra.mxu0 %v430
    %v601 = vpop.f32.mrf.mxu0
    %v602 = vadd.f32 %v469, %v601
    %v603 = vpop.f32.mrf.mxu0
    %v604 = vpop.f32.mrf.mxu0
    %v605 = vadd.f32 %v469, %v604
    %v606 = vpop.f32.mrf.mxu0
    %607 = vdwg.mxu0
    %v608 = vpack.c.bf16 %v605, %v602
    %v610 = vunpack.c.l.b16 %v608
    %v611 = vunpack.c.h.b16 %v608
    %v612 = vpack.c.b16 %v610, %v610
    %v613 = vpack.c.b16 %v611, %v611
    %616 = vst [vmem:[#allocation10] sm:$0xf] %v612
    %617 = vst [vmem:[#allocation10 + $0x4] sm:$0xf] %v613
    // Predicated region
    $region46: #{tpu_custom_call.1} parent=1 // pred_check
      _
    $region47: #{tpu_custom_call.1} parent=1 // pred_check_branch
      %619 = sbr.rel (0) target = $region49
    $region48: #{tpu_custom_call.1} parent=1 // pred_region
      %s621 = ssub.s32 128, 128
      %622 = vsyncadd [#allocation4], %s621
      %s623 = sshll.u32 [#allocation10], 4
      %s624 = int_to_ptr.vmem [resolvable:$true] %s623
      %629 = dma.vmem_to_hbm [thread:$0]  %s624, 128, %s7, [#allocation4], 64, 64, 4
    $region49: #{tpu_custom_call.1} parent=1 // pred_fallthru
      _
    // Predicated region
    $region50: #{tpu_custom_call.1} parent=1 // pred_check
      _
    $region51: #{tpu_custom_call.1} parent=1 // pred_check_branch
      %631 = sbr.rel (0) target = $region53
    $region52: #{tpu_custom_call.1} parent=1 // pred_region
      %632 = dma.done [#allocation4], 128
    $region53: #{tpu_custom_call.1} parent=1 // pred_fallthru
      _
    %633 = vsyncpa [#allocation3], 1
    %634 = vsyncpa [#allocation6], 1
    %635 = vsyncpa [#allocation9], 1
    %636 = vsyncpa [#allocation4], 1

</llo_original>
